<compile_context>
chip_gen: v5e
topology: v5e:2x2
jax: 0.10.0
libtpu: 0.0.40
codegen_flags: <defaults>
</compile_context>

<pallas_src>
import math

import jax
import jax.numpy as jnp
from jax.experimental import pallas as pl
from jax.experimental.pallas import tpu as pltpu


# ---------------------------------------------------------------------------
# Hardware-aware sizing helpers
# ---------------------------------------------------------------------------

_DEFAULT_VMEM_CAPACITY = 64 * 1024 * 1024  # v7x per-TensorCore worst case


def _vmem_capacity_bytes():
    """Physical VMEM per TensorCore; conservative fallback if the query fails."""
    try:
        info = pltpu.get_tpu_info()
        cap = int(getattr(info, "vmem_capacity_bytes", 0))
        if cap > 0:
            return cap
    except Exception:
        pass
    return _DEFAULT_VMEM_CAPACITY


def _sublane_multiple(dtype):
    """Native sublane tile: 8 for f32, 16 for bf16, 32 for int8/fp8."""
    return max(8, 32 // jnp.dtype(dtype).itemsize)


def _plan_tiles(m, k, dtype, out_itemsize):
    """Pick (tm, tk, vmem_limit_bytes) from the chip's VMEM capacity."""
    itemsize = jnp.dtype(dtype).itemsize
    align = _sublane_multiple(dtype)

    cap = _vmem_capacity_bytes()
    vmem_limit = int(cap * 3 // 4)        # v5e/v6e: ~96 MiB, v7x: ~48 MiB
    budget = int(vmem_limit * 0.85)       # headroom for compiler scratch

    def per_row(tk):
        # Per-TM-row VMEM cost (excluding W):
        return (2 * tk * itemsize          # double-buffered x tile
                + tk * 4                   # [TM,TK] product temporary (f32 worst case)
                + 128 * 4                  # lane-padded [TM,1] f32 accumulator
                + 2 * 128 * out_itemsize)  # double-buffered lane-padded output block

    w_cost = lambda tk: 2 * 8 * tk * itemsize  # double-buffered, sublane-padded W tile

    # --- K tiling guard: even an `align`-row tile of full K must fit --------
    if align * per_row(k) + w_cost(k) > budget:
        per_lane = align * (2 * itemsize + 4) + 2 * 8 * itemsize
        fixed = align * (128 * 4 + 2 * 128 * out_itemsize)
        tk = (budget - fixed) // per_lane
        tk = max(128, (tk // 128) * 128)   # lane-aligned K tile
        tk = min(tk, k)
    else:
        tk = k

    # --- M tiling ------------------------------------------------------------
    budget_x = max(budget - w_cost(tk), align * per_row(tk))
    tm = max(align, budget_x // per_row(tk))

    # v7x: both TensorCores must issue DMAs under dimension_semantics=("parallel",...)
    # -> keep >= 2 grid steps when there is enough data, while each step's x slab
    # stays on the >= ~4 MiB HBM-roofline plateau.
    plateau = 4 * 1024 * 1024
    if m * k * itemsize >= 2 * plateau:
        tm = min(tm, pl.cdiv(m, 2))

    tm = min(tm, m)
    if tm < m:
        tm = max(align, (tm // align) * align)  # dtype-aware sublane alignment

    return tm, tk, vmem_limit


# ---------------------------------------------------------------------------
# Kernel
# ---------------------------------------------------------------------------

def _make_kernel(k_total, tk):
    """logits = x @ W.T + b, out_features == 1, optionally K-tiled."""
    needs_k_mask = (k_total % tk) != 0

    def kernel(x_ref, w_ref, b_ref, o_ref, acc_ref):
        # x_ref: [TM, TK] (VMEM, tiled over M and K)
        # w_ref: [1, TK]  (VMEM, resident across M steps)
        # b_ref: [1]      (SMEM scalar)
        # o_ref: [TM, 1]
        # acc_ref: [TM, 1] f32 scratch (persists across the K grid axis)
        kk = pl.program_id(1)

        @pl.when(kk == 0)
        def _():
            acc_ref[...] = jnp.zeros_like(acc_ref)

        x = x_ref[...]
        w = w_ref[...]
        # VPU multiply in the input dtype (bf16 VALU on v6e/v7x; Mosaic inserts
        # casts on v5e); the reduction accumulates in f32.
        prod = x * w
        if needs_k_mask:
            # Last K tile reads past K; zero the out-of-range columns.
            col = jax.lax.broadcasted_iota(jnp.int32, prod.shape, 1) + kk * tk
            prod = jnp.where(col < k_total, prod, jnp.zeros_like(prod))
        acc_ref[...] += jnp.sum(prod, axis=-1, keepdims=True, dtype=jnp.float32)

        @pl.when(kk == pl.num_programs(1) - 1)
        def _():
            o_ref[...] = (acc_ref[...] + b_ref[0]).astype(o_ref.dtype)

    return kernel


@jax.jit
def pallas_regression_matvec(x, w, b):
    """x: [M, K], w: [1, K] (PyTorch nn.Linear [out, in]), b: [1] -> [M, 1]."""
    m, k = x.shape
    assert w.shape == (1, k), w.shape
    assert b.shape == (1,), b.shape

    out_dtype = x.dtype
    tm, tk, vmem_limit = _plan_tiles(m, k, x.dtype, jnp.dtype(out_dtype).itemsize)
    grid = (pl.cdiv(m, tm), pl.cdiv(k, tk))

    cost = pl.CostEstimate(
        flops=2 * m * k,
        transcendentals=0,
        bytes_accessed=(m * k * x.dtype.itemsize
                        + k * w.dtype.itemsize
                        + b.dtype.itemsize
                        + m * jnp.dtype(out_dtype).itemsize),
    )

    kernel = _make_kernel(k, tk)

    return pl.pallas_call(
        kernel,
        out_shape=jax.ShapeDtypeStruct((m, 1), out_dtype),
        grid=grid,
        in_specs=[
            pl.BlockSpec((tm, tk), lambda i, j: (i, j)),           # x: tiled over M (and K)
            pl.BlockSpec((1, tk), lambda i, j: (0, j)),            # W: resident across M steps
            pl.BlockSpec(memory_space=pltpu.MemorySpace.SMEM),     # b: scalar in SMEM
        ],
        out_specs=pl.BlockSpec((tm, 1), lambda i, j: (i, 0)),
        scratch_shapes=[pltpu.VMEM((tm, 1), jnp.float32)],         # f32 accumulator
        compiler_params=pltpu.CompilerParams(
            dimension_semantics=("parallel", "arbitrary"),  # megacore over M, reduce over K
            vmem_limit_bytes=vmem_limit,
        ),
        cost_estimate=cost,
    )(x, w, b)


def regression_head_forward(x, w, b, *, force_pallas=False):
    """RegressionHead.forward: a single Linear(hidden, 1)."""
    m, k = x.shape
    if not force_pallas and m * k * x.dtype.itemsize < (2 << 20):
        # Tiny matvec (< ~2 MiB of x): pallas_call launch / pipeline prologue
        # dominates; let XLA fuse it into x's producer instead.
        return x @ w.T + b
    return pallas_regression_matvec(x, w, b)


if __name__ == "__main__":
    key = jax.random.PRNGKey(0)
    batch, hidden = 8, 32  # RegressionHead structure: layer_dims = [hidden, 1]

    kx, kw, kb = jax.random.split(key, 3)
    bound = 1.0 / math.sqrt(hidden)  # nn.Linear default init bound
    x = jax.random.normal(kx, (batch, hidden), dtype=jnp.float32)
    w = jax.random.uniform(kw, (1, hidden), jnp.float32, -bound, bound)  # [out, in]
    b = jax.random.uniform(kb, (1,), jnp.float32, -bound, bound)

    # Force the Pallas path so the TPU kernel is exercised even at this tiny size.
    logits = regression_head_forward(x, w, b, force_pallas=True)
    logits = jax.block_until_ready(logits)

    # Plain-JAX reference (== PyTorch nn.Linear forward).
    ref = x @ w.T + b
    assert logits.shape == (batch, 1), logits.shape
    assert jnp.allclose(logits, ref, atol=1e-5, rtol=1e-5), float(
        jnp.max(jnp.abs(logits - ref))
    )

    print("KERNEL_OK")
</pallas_src>

<mosaic_0001>
module attributes {stable_mosaic.version = 11 : i64} {
  func.func @kernel(%arg0: i32, %arg1: i32, %arg2: memref<8x32xf32, #tpu.memory_space<vmem>>, %arg3: memref<1x32xf32, #tpu.memory_space<vmem>>, %arg4: memref<1xf32, #tpu.memory_space<smem>>, %arg5: memref<8x1xf32, #tpu.memory_space<vmem>>, %arg6: memref<8x1xf32, #tpu.memory_space<vmem>>) attributes {dimension_semantics = [#tpu.dimension_semantics<parallel>, #tpu.dimension_semantics<arbitrary>], iteration_bounds = array<i64: 1, 1>, scalar_prefetch = 0 : i64, scratch_operands = 1 : i64, tpu.core_type = #tpu.core_type<tc>, window_params = [{transform_indices = @transform_0, window_bounds = array<i64: 8, 32>}, {transform_indices = @transform_1, window_bounds = array<i64: 1, 32>}, {transform_indices = @transform_2, window_bounds = array<i64: 1>}, {transform_indices = @transform_3, window_bounds = array<i64: 8, 1>}]} {
    %c0_i32 = arith.constant 0 : i32
    %0 = arith.cmpi eq, %arg1, %c0_i32 : i32
    %1 = arith.extui %0 : i1 to i32
    %c0_i32_0 = arith.constant 0 : i32
    %2 = arith.cmpi ne, %1, %c0_i32_0 : i32
    scf.if %2 {
      %cst_10 = arith.constant 0.000000e+00 : f32
      %15 = vector.broadcast %cst_10 : f32 to vector<8x1xf32>
      %c0_11 = arith.constant 0 : index
      %c0_12 = arith.constant 0 : index
      %16 = vector.load %arg6[%c0_11, %c0_12] : memref<8x1xf32, #tpu.memory_space<vmem>>, vector<8x1xf32>
      tpu.vector_store %arg6[%c0_11, %c0_12], %15 {strides = array<i32>} : memref<8x1xf32, #tpu.memory_space<vmem>>, vector<8x1xf32>,
    } else {
    }
    %c0 = arith.constant 0 : index
    %c0_1 = arith.constant 0 : index
    %3 = vector.load %arg2[%c0, %c0_1] : memref<8x32xf32, #tpu.memory_space<vmem>>, vector<8x32xf32>
    %c0_2 = arith.constant 0 : index
    %c0_3 = arith.constant 0 : index
    %4 = vector.load %arg3[%c0_2, %c0_3] : memref<1x32xf32, #tpu.memory_space<vmem>>, vector<1x32xf32>
    %5 = vector.broadcast %4 : vector<1x32xf32> to vector<8x32xf32>
    %6 = arith.mulf %3, %5 : vector<8x32xf32>
    %c0_4 = arith.constant 0 : index
    %c0_5 = arith.constant 0 : index
    %7 = vector.load %arg6[%c0_4, %c0_5] : memref<8x1xf32, #tpu.memory_space<vmem>>, vector<8x1xf32>
    %cst = arith.constant dense<0.000000e+00> : vector<8xf32>
    %8 = vector.multi_reduction <add>, %6, %cst [1] : vector<8x32xf32> to vector<8xf32>
    %9 = vector.shape_cast %8 : vector<8xf32> to vector<8x1xf32>
    %10 = arith.addf %7, %9 : vector<8x1xf32>
    %c0_6 = arith.constant 0 : index
    %c0_7 = arith.constant 0 : index
    %11 = vector.load %arg6[%c0_6, %c0_7] : memref<8x1xf32, #tpu.memory_space<vmem>>, vector<8x1xf32>
    tpu.vector_store %arg6[%c0_6, %c0_7], %10 {strides = array<i32>} : memref<8x1xf32, #tpu.memory_space<vmem>>, vector<8x1xf32>,
    %c0_i32_8 = arith.constant 0 : i32
    %12 = arith.cmpi eq, %arg1, %c0_i32_8 : i32
    %13 = arith.extui %12 : i1 to i32
    %c0_i32_9 = arith.constant 0 : i32
    %14 = arith.cmpi ne, %13, %c0_i32_9 : i32
    scf.if %14 {
      %c0_10 = arith.constant 0 : index
      %c0_11 = arith.constant 0 : index
      %15 = vector.load %arg6[%c0_10, %c0_11] : memref<8x1xf32, #tpu.memory_space<vmem>>, vector<8x1xf32>
      %c0_12 = arith.constant 0 : index
      %16 = memref.load %arg4[%c0_12] : memref<1xf32, #tpu.memory_space<smem>>
      %17 = vector.broadcast %16 : f32 to vector<8x1xf32>
      %18 = arith.addf %15, %17 : vector<8x1xf32>
      %c0_13 = arith.constant 0 : index
      %c0_14 = arith.constant 0 : index
      %19 = vector.load %arg5[%c0_13, %c0_14] : memref<8x1xf32, #tpu.memory_space<vmem>>, vector<8x1xf32>
      tpu.vector_store %arg5[%c0_13, %c0_14], %18 {strides = array<i32>} : memref<8x1xf32, #tpu.memory_space<vmem>>, vector<8x1xf32>,
    } else {
    }
    return
  }
  func.func @transform_0(%arg0: i32, %arg1: i32) -> (i32, i32) {
    %c0_i32 = arith.constant 0 : i32
    return %arg0, %arg1 : i32, i32
  }
  func.func @transform_1(%arg0: i32, %arg1: i32) -> (i32, i32) {
    %c0_i32 = arith.constant 0 : i32
    %c0_i32_0 = arith.constant 0 : i32
    return %c0_i32, %arg1 : i32, i32
  }
  func.func @transform_2(%arg0: i32, %arg1: i32) -> i32 {
    %c0_i32 = arith.constant 0 : i32
    %c0_i32_0 = arith.constant 0 : i32
    return %c0_i32 : i32
  }
  func.func @transform_3(%arg0: i32, %arg1: i32) -> (i32, i32) {
    %c0_i32 = arith.constant 0 : i32
    %c0_i32_0 = arith.constant 0 : i32
    return %arg0, %c0_i32 : i32, i32
  }
}

</mosaic_0001>

<llo_original>
// kernel: pallas_regression_matvec.1
$region0: #{pallas_regression_matvec.1}
  #allocation0 [shape = 'u32[]', space=smem, size = 0x4, offset = 0x4, fixed_abs, tag = 'smem constant byte address 0x4 - core index']
  #allocation1 [shape = 'u32[72,128]{1,0:T(1,128)}', space=vmem, size = 0x9000, scoped, tag = 'internal scratch']
  #allocation2 [shape = 'f32[8,1]{1,0:T(8,128)}', space=vmem, size = 0x1000, scoped, tag = 'scratch operand']
  #allocation3 [shape = 'f32[1]{0:T(128)S(6)}', space=smem, size = 0x200, scoped, tag = 'scoped memory for pallas_regression_matvec.1']
  %s0 = inlined_call_operand.hbm [shape: f32[8,32], index: 0, kind: input, shape index: {}]
  %s1 = inlined_call_operand.vmem [shape: f32[1,32], index: 1, kind: input, shape index: {}]
  %s2 = inlined_call_operand.<no memory space> [shape: f32[1], index: 2, kind: input, shape index: {}]
  %s3 = inlined_call_operand.vmem [shape: f32[8,1], index: 3, kind: output, shape index: {}]
  %s4 = sld [smem:[#allocation0]]
  $region34: #{pallas_regression_matvec.1} parent=0
    _
  %s6 = ssub.s32 1, %s4
  %s7 = scalar_select 0, %s6, %s4
  %8 = sst [smem:[#allocation3]] %s2
  $region1: #{pallas_regression_matvec.1} parent=0
    #allocation4 [shape = 'u8[4096]{0}', space=vmem, size = 0x1000, scoped, tag = 'input window, operand 0, single buffered']
    #allocation5 [shape = 's32[1]{0}', space=sflag, size = 0x4, scoped, tag = 'scoped memory for pallas_regression_matvec.1']
    %9 = vsyncpa [#allocation5], 0
    // Predicated region
    $region2: #{pallas_regression_matvec.1} parent=1 // pred_check
      _
    $region3: #{pallas_regression_matvec.1} parent=1 // pred_check_branch
      %11 = sbr.rel (0) target = $region5
    $region4: #{pallas_regression_matvec.1} parent=1 // pred_region
      %13 = vsyncadd [#allocation5], 0
      %s15 = sshll.u32 %s0, 4
      %s16 = int_to_ptr.hbm [resolvable:$true] %s15
      %s17 = sshll.u32 [#allocation4], 4
      %s18 = int_to_ptr.vmem [resolvable:$true] %s17
      %20 = dma.hbm_to_vmem [thread:$0]  %s16, 128, %s18, [#allocation5]
    $region5: #{pallas_regression_matvec.1} parent=1 // pred_fallthru
      _
    // Predicated region
    $region6: #{pallas_regression_matvec.1} parent=1 // pred_check
      _
    $region7: #{pallas_regression_matvec.1} parent=1 // pred_check_branch
      %22 = sbr.rel (0) target = $region9
    $region8: #{pallas_regression_matvec.1} parent=1 // pred_region
      _
    $region9: #{pallas_regression_matvec.1} parent=1 // pred_fallthru
      _
    // Predicated region
    $region10: #{pallas_regression_matvec.1} parent=1 // pred_check
      _
    $region11: #{pallas_regression_matvec.1} parent=1 // pred_check_branch
      %24 = sbr.rel (0) target = $region13
    $region12: #{pallas_regression_matvec.1} parent=1 // pred_region
      _
    $region13: #{pallas_regression_matvec.1} parent=1 // pred_fallthru
      _
    // Predicated region
    $region14: #{pallas_regression_matvec.1} parent=1 // pred_check
      _
    $region15: #{pallas_regression_matvec.1} parent=1 // pred_check_branch
      %26 = sbr.rel (0) target = $region17
    $region16: #{pallas_regression_matvec.1} parent=1 // pred_region
      %28 = dma.done [#allocation5], 128
    $region17: #{pallas_regression_matvec.1} parent=1 // pred_fallthru
      _
    %p29 = scmp.eq.s32.totalorder 0, 0
    // Predicated region
    $region18: #{pallas_regression_matvec.1} parent=1 // pred_check
      %p30 = pneg %p29
    $region19: #{pallas_regression_matvec.1} parent=1 // pred_check_branch
      %32 = sbr.rel (%p30) target = $region21
    $region20: #{pallas_regression_matvec.1} parent=1 // pred_region
      %vm33 = vcmask 7168
      %34 = vst.msk [vmem:[#allocation2] sm:$0xff] %vm33, 0.0
    $region21: #{pallas_regression_matvec.1} parent=1 // pred_fallthru
      _
    %v35 = vld [vmem:[#allocation4] sm:$0xff]
    %v36 = vld [vmem:[%s1] sm:$0x1]
    %v38 = vperm.slane %v36, 0
    %v40 = vmul.f32 %v35, %v38
    %v41 = vld [vmem:[#allocation2] sm:$0xff]
    %vm42 = vcmask 261120
    %v43 = vsel %vm42, %v40, 0.0
    %44 = vadd.xlane.f32.xlu0 %v43
    %v45 = vpop.xlane.xlu0 %44
    %v46 = vadd.f32 %v41, %v45
    %vm47 = vcmask 7168
    %48 = vst.msk [vmem:[#allocation2] sm:$0xff] %vm47, %v46
    // Predicated region
    $region22: #{pallas_regression_matvec.1} parent=1 // pred_check
      %p49 = pneg %p29
    $region23: #{pallas_regression_matvec.1} parent=1 // pred_check_branch
      %51 = sbr.rel (%p49) target = $region25
    $region24: #{pallas_regression_matvec.1} parent=1 // pred_region
      %v52 = vld [vmem:[#allocation2] sm:$0xff]
      %s53 = sld [smem:[#allocation3]]
      %v54 = vstv %s53
      %v55 = vadd.f32 %v52, %v54
      %56 = vst.msk [vmem:[%s3] sm:$0xff] %vm47, %v55
    $region25: #{pallas_regression_matvec.1} parent=1 // pred_fallthru
      _
    // Predicated region
    $region26: #{pallas_regression_matvec.1} parent=1 // pred_check
      _
    $region27: #{pallas_regression_matvec.1} parent=1 // pred_check_branch
      %58 = sbr.rel (0) target = $region29
    $region28: #{pallas_regression_matvec.1} parent=1 // pred_region
      _
    $region29: #{pallas_regression_matvec.1} parent=1 // pred_fallthru
      _
    // Predicated region
    $region30: #{pallas_regression_matvec.1} parent=1 // pred_check
      _
    $region31: #{pallas_regression_matvec.1} parent=1 // pred_check_branch
      %60 = sbr.rel (0) target = $region33
    $region32: #{pallas_regression_matvec.1} parent=1 // pred_region
      _
    $region33: #{pallas_regression_matvec.1} parent=1 // pred_fallthru
      _
    %61 = vsyncpa [#allocation5], 1

</llo_original>
